<compile_context>
chip_gen: v7x
topology: tpu7x:2x2x1
jax: 0.10.0
libtpu: 0.0.40
codegen_flags: <defaults>
</compile_context>

<pallas_src>
import numpy as np
import jax
import jax.numpy as jnp
from jax.experimental import pallas as pl
from jax.experimental.pallas import tpu as pltpu


def _fused_kernel(x_ref, wband_ref, bias_ref, pmat_ref, wpool_ref, blin_ref,
                  out_ref):
    """One grid step = one batch block (BT images); everything stays in VMEM.

    x_ref:     (BT*(H+2), 128)   bf16  zero-padded NHWC rows, channels
                                       flattened into lanes, lane-padded 72->128.
    wband_ref: (3, 128, W*Cout)  bf16  banded conv weights (kw taps + BN scale
                                       folded in), K zero-padded to 128.
    bias_ref:  (1, W*Cout)       f32   folded BN bias, tiled over w.
    pmat_ref:  (BT, BT*(H+2)-2)  f32   0/1 per-image H-pool/selection matrix
                                       (drops rows straddling image borders).
    wpool_ref: (W*Cout, NCP)     bf16  fused (avg-pool-over-W + Linear) weights
                                       = wlin.T/(H*W) tiled over w, lane-padded.
    blin_ref:  (1, NCP)          f32   Linear bias, lane-padded.
    out_ref:   (BT, NCP)         f32   logits for this batch block.
    """
    rows = x_ref.shape[0]
    m = rows - 2                         # conv output rows for the whole slab
    x = x_ref[...]                       # (rows, 128) bf16

    # Conv2d(3x3, pad=1) as three banded matmuls over the whole batch slab:
    # the kw taps live inside the banded weights, the kh taps are the three
    # sublane-shifted slab views.  bf16 operands, f32 MXU accumulation.
    acc = jnp.dot(x[0:m, :], wband_ref[0], preferred_element_type=jnp.float32)
    acc += jnp.dot(x[1:m + 1, :], wband_ref[1],
                   preferred_element_type=jnp.float32)
    acc += jnp.dot(x[2:m + 2, :], wband_ref[2],
                   preferred_element_type=jnp.float32)

    # Folded BatchNorm bias + ReLU6 on the f32 accumulator (lane-dense slab).
    y = jnp.clip(acc + bias_ref[...], 0.0, 6.0)          # (m, W*Cout) f32

    # AdaptiveAvgPool2d(1) + Linear, fused:
    #  * 0/1 selection matmul sums the H valid rows of each image (and drops
    #    the garbage rows straddling image boundaries in the slab),
    #  * the W-sum and the Linear happen in one matmul whose weights already
    #    carry the 1/(H*W) factor.
    pooled = jnp.dot(pmat_ref[...], y,
                     preferred_element_type=jnp.float32)  # (BT, W*Cout)
    out_ref[...] = jnp.dot(pooled, wpool_ref[...],
                           preferred_element_type=jnp.float32) + blin_ref[...]


def base_model_forward(x_nchw, params):
    """Pallas equivalent of BaseModel.forward for the instantiated layer stack."""
    wconv, gamma, beta, rmean, rvar, wlin, blin = params
    B, Cin, H, W = x_nchw.shape
    Cout = wconv.shape[0]
    ncls = wlin.shape[0]

    WC = (W + 2) * Cin                        # raw lane width of a padded row
    KP = ((WC + 127) // 128) * 128            # lane-padded K (72 -> 128)
    NL = W * Cout                             # conv-output lane width (=128)
    NCP = ((ncls + 127) // 128) * 128         # lane-dense (padded) logits width

    # ---- batch blocking ----
    BT = 8 if B > 8 else B                    # >=2 grid steps once B >= 16
    B_pad = ((B + BT - 1) // BT) * BT
    ROWS = BT * (H + 2)                       # slab rows per grid step
    M = ROWS - 2                              # conv output rows per slab

    # ---- host-side parameter folding (runs once, pure setup) ----
    wconv_np = np.asarray(wconv, np.float32)
    gamma_np = np.asarray(gamma, np.float32)
    beta_np = np.asarray(beta, np.float32)
    rmean_np = np.asarray(rmean, np.float32)
    rvar_np = np.asarray(rvar, np.float32)
    wlin_np = np.asarray(wlin, np.float32)
    blin_np = np.asarray(blin, np.float32)

    scale = gamma_np / np.sqrt(rvar_np + 1e-5)            # BN -> conv fold
    wf = wconv_np * scale[:, None, None, None]            # (Cout,Cin,3,3)
    bias = beta_np - rmean_np * scale                     # (Cout,)

    # Banded conv weights: wband[kh][(w+kw)*Cin + ci, w*Cout + co] = wf[co,ci,kh,kw]
    # (K zero-padded to 128 so the slab rows are vreg/K-dense).
    wband = np.zeros((3, KP, NL), np.float32)
    for kh in range(3):
        for kw in range(3):
            blk = wf[:, :, kh, kw].T                      # (Cin, Cout)
            for w in range(W):
                wband[kh, (w + kw) * Cin:(w + kw + 1) * Cin,
                      w * Cout:(w + 1) * Cout] = blk
    wband = jnp.asarray(wband, jnp.bfloat16)

    bias_vec = jnp.asarray(np.tile(bias, W).reshape(1, NL), jnp.float32)

    # 0/1 H-pool / row-selection matrix over the stacked slab.
    pmat = np.zeros((BT, M), np.float32)
    for b in range(BT):
        pmat[b, b * (H + 2): b * (H + 2) + H] = 1.0
    pmat = jnp.asarray(pmat)

    # Fused (avg-pool + Linear) weights / bias, zero-padded to NCP lanes.
    wpool = np.zeros((NL, NCP), np.float32)
    wpool[:, :ncls] = np.tile(wlin_np.T / float(H * W), (W, 1))
    wpool = jnp.asarray(wpool, jnp.bfloat16)
    blin_pad = jnp.asarray(np.pad(blin_np, (0, NCP - ncls)).reshape(1, NCP),
                           jnp.float32)

    # ---- glue: NCHW -> padded NHWC slab, channels flattened into lanes ----
    # TODO(synk): this transpose/pad is one extra XLA pass over the input; at
    # real batch sizes it could be folded into the Pallas DMA (pl.ANY input)
    # or removed by accepting NHWC input directly.
    x = jnp.transpose(x_nchw, (0, 2, 3, 1))               # (B, H, W, Cin)
    xp = jnp.pad(x, ((0, B_pad - B), (1, 1), (1, 1), (0, 0)))
    xp = xp.reshape(B_pad, H + 2, WC)
    xp = jnp.pad(xp, ((0, 0), (0, 0), (0, KP - WC)))       # lane-pad K to 128
    xp = xp.reshape(B_pad * (H + 2), KP).astype(jnp.bfloat16)

    steps = B_pad // BT
    flops = steps * (3 * 2 * M * KP * NL + 2 * BT * M * NL + 2 * BT * NL * NCP)
    bytes_accessed = (2 * xp.size + 2 * wband.size + 4 * bias_vec.size
                      + 4 * pmat.size + 2 * wpool.size + 4 * blin_pad.size
                      + 4 * B_pad * NCP)

    out = pl.pallas_call(
        _fused_kernel,
        out_shape=jax.ShapeDtypeStruct((B_pad, NCP), jnp.float32),
        grid=(steps,),
        in_specs=[
            pl.BlockSpec((ROWS, KP), lambda i: (i, 0)),     # per-step batch slab
            pl.BlockSpec((3, KP, NL), lambda i: (0, 0, 0)), # weights (resident)
            pl.BlockSpec((1, NL), lambda i: (0, 0)),
            pl.BlockSpec((BT, M), lambda i: (0, 0)),
            pl.BlockSpec((NL, NCP), lambda i: (0, 0)),
            pl.BlockSpec((1, NCP), lambda i: (0, 0)),
        ],
        out_specs=pl.BlockSpec((BT, NCP), lambda i: (i, 0)),
        compiler_params=pltpu.CompilerParams(
            dimension_semantics=("parallel",)),
        cost_estimate=pl.CostEstimate(flops=flops, transcendentals=0,
                                      bytes_accessed=bytes_accessed),
    )(xp, wband, bias_vec, pmat, wpool, blin_pad)

    # Final out.reshape(B, -1) of BaseModel.forward + drop lane/batch padding.
    return out[:B, :ncls]


def _reference_forward(x_nchw, params):
    """Pure-JAX high-precision reference mirroring the PyTorch layer stack."""
    wconv, gamma, beta, rmean, rvar, wlin, blin = params
    y = jax.lax.conv_general_dilated(
        x_nchw, wconv, window_strides=(1, 1), padding="SAME",
        dimension_numbers=("NCHW", "OIHW", "NCHW"),
        precision=jax.lax.Precision.HIGHEST)
    y = (y - rmean[None, :, None, None]) * jax.lax.rsqrt(
        rvar[None, :, None, None] + 1e-5) * gamma[None, :, None, None] \
        + beta[None, :, None, None]
    y = jnp.clip(y, 0.0, 6.0)
    y = jnp.mean(y, axis=(2, 3))                                  # (B, Cout)
    return jnp.dot(y, wlin.T, precision=jax.lax.Precision.HIGHEST) + blin


if __name__ == "__main__":
    B, Cin, H, W = 2, 4, 16, 16
    Cout, NCLS = 8, 10

    key = jax.random.PRNGKey(0)
    ks = jax.random.split(key, 8)
    x = jax.random.normal(ks[0], (B, Cin, H, W), jnp.float32)

    # Deterministic synthetic parameters (PyTorch layouts).
    wconv = 0.1 * jax.random.normal(ks[1], (Cout, Cin, 3, 3), jnp.float32)
    gamma = 1.0 + 0.1 * jax.random.normal(ks[2], (Cout,), jnp.float32)
    beta = 0.1 * jax.random.normal(ks[3], (Cout,), jnp.float32)
    rmean = 0.1 * jax.random.normal(ks[4], (Cout,), jnp.float32)
    rvar = jnp.abs(jax.random.normal(ks[5], (Cout,), jnp.float32)) + 0.5
    wlin = 0.1 * jax.random.normal(ks[6], (NCLS, Cout), jnp.float32)
    blin = 0.1 * jax.random.normal(ks[7], (NCLS,), jnp.float32)
    params = (wconv, gamma, beta, rmean, rvar, wlin, blin)

    out = base_model_forward(x, params)
    out = jax.block_until_ready(out)
    assert out.shape == (B, NCLS)

    ref = _reference_forward(x, params)
    # bf16 matmul operands (single-pass MXU) vs HIGHEST-precision reference.
    assert jnp.allclose(out, ref, rtol=1e-2, atol=1e-2), (
        f"max abs err {jnp.max(jnp.abs(out - ref))}")

    # TODO(synk): saveModel/loadModel/torch.save & the model_rootpath mkdir are
    # host-side I/O with no kernel equivalent; layers_list is defined by the
    # MobileNetV2 subclass, so a representative stack is instantiated here.
    print("KERNEL_OK")
</pallas_src>

<mosaic_0001>
module attributes {stable_mosaic.version = 11 : i64} {
  func.func @_fused_kernel(%arg0: i32, %arg1: memref<36x128xbf16, #tpu.memory_space<vmem>>, %arg2: memref<3x128x128xbf16, #tpu.memory_space<vmem>>, %arg3: memref<1x128xf32, #tpu.memory_space<vmem>>, %arg4: memref<2x34xf32, #tpu.memory_space<vmem>>, %arg5: memref<128x128xbf16, #tpu.memory_space<vmem>>, %arg6: memref<1x128xf32, #tpu.memory_space<vmem>>, %arg7: memref<2x128xf32, #tpu.memory_space<vmem>>) attributes {dimension_semantics = [#tpu.dimension_semantics<parallel>], iteration_bounds = array<i64: 1>, scalar_prefetch = 0 : i64, scratch_operands = 0 : i64, tpu.core_type = #tpu.core_type<tc>, window_params = [{transform_indices = @transform_0, window_bounds = array<i64: 36, 128>}, {pipeline_mode = #tpu.pipeline_mode<synchronous>, transform_indices = @transform_1, window_bounds = array<i64: 3, 128, 128>}, {pipeline_mode = #tpu.pipeline_mode<synchronous>, transform_indices = @transform_2, window_bounds = array<i64: 1, 128>}, {pipeline_mode = #tpu.pipeline_mode<synchronous>, transform_indices = @transform_3, window_bounds = array<i64: 2, 34>}, {pipeline_mode = #tpu.pipeline_mode<synchronous>, transform_indices = @transform_4, window_bounds = array<i64: 128, 128>}, {pipeline_mode = #tpu.pipeline_mode<synchronous>, transform_indices = @transform_5, window_bounds = array<i64: 1, 128>}, {transform_indices = @transform_6, window_bounds = array<i64: 2, 128>}]} {
    %c0 = arith.constant 0 : index
    %c0_0 = arith.constant 0 : index
    %0 = vector.load %arg1[%c0, %c0_0] : memref<36x128xbf16, #tpu.memory_space<vmem>>, vector<36x128xbf16>
    %1 = vector.extract_strided_slice %0 {offsets = [0, 0], sizes = [34, 128], strides = [1, 1]} : vector<36x128xbf16> to vector<34x128xbf16>
    %c0_1 = arith.constant 0 : index
    %c0_2 = arith.constant 0 : index
    %c0_3 = arith.constant 0 : index
    %2 = vector.load %arg2[%c0_1, %c0_2, %c0_3] : memref<3x128x128xbf16, #tpu.memory_space<vmem>>, vector<1x128x128xbf16>
    %3 = vector.shape_cast %2 : vector<1x128x128xbf16> to vector<128x128xbf16>
    %cst = arith.constant dense<0.000000e+00> : vector<34x128xf32>
    %4 = tpu.matmul %1, %3, %cst {dimension_numbers = #tpu.dot_dimension_numbers<[1], [0], [0], [1], [0, 0, 1, 1], [], []>} : vector<34x128xbf16>, vector<128x128xbf16>, vector<34x128xf32> -> vector<34x128xf32>
    %5 = vector.extract_strided_slice %0 {offsets = [1, 0], sizes = [34, 128], strides = [1, 1]} : vector<36x128xbf16> to vector<34x128xbf16>
    %c1 = arith.constant 1 : index
    %c0_4 = arith.constant 0 : index
    %c0_5 = arith.constant 0 : index
    %6 = vector.load %arg2[%c1, %c0_4, %c0_5] : memref<3x128x128xbf16, #tpu.memory_space<vmem>>, vector<1x128x128xbf16>
    %7 = vector.shape_cast %6 : vector<1x128x128xbf16> to vector<128x128xbf16>
    %cst_6 = arith.constant dense<0.000000e+00> : vector<34x128xf32>
    %8 = tpu.matmul %5, %7, %cst_6 {dimension_numbers = #tpu.dot_dimension_numbers<[1], [0], [0], [1], [0, 0, 1, 1], [], []>} : vector<34x128xbf16>, vector<128x128xbf16>, vector<34x128xf32> -> vector<34x128xf32>
    %9 = arith.addf %4, %8 : vector<34x128xf32>
    %10 = vector.extract_strided_slice %0 {offsets = [2, 0], sizes = [34, 128], strides = [1, 1]} : vector<36x128xbf16> to vector<34x128xbf16>
    %c2 = arith.constant 2 : index
    %c0_7 = arith.constant 0 : index
    %c0_8 = arith.constant 0 : index
    %11 = vector.load %arg2[%c2, %c0_7, %c0_8] : memref<3x128x128xbf16, #tpu.memory_space<vmem>>, vector<1x128x128xbf16>
    %12 = vector.shape_cast %11 : vector<1x128x128xbf16> to vector<128x128xbf16>
    %cst_9 = arith.constant dense<0.000000e+00> : vector<34x128xf32>
    %13 = tpu.matmul %10, %12, %cst_9 {dimension_numbers = #tpu.dot_dimension_numbers<[1], [0], [0], [1], [0, 0, 1, 1], [], []>} : vector<34x128xbf16>, vector<128x128xbf16>, vector<34x128xf32> -> vector<34x128xf32>
    %14 = arith.addf %9, %13 : vector<34x128xf32>
    %c0_10 = arith.constant 0 : index
    %c0_11 = arith.constant 0 : index
    %15 = vector.load %arg3[%c0_10, %c0_11] : memref<1x128xf32, #tpu.memory_space<vmem>>, vector<1x128xf32>
    %16 = vector.broadcast %15 : vector<1x128xf32> to vector<34x128xf32>
    %17 = arith.addf %14, %16 : vector<34x128xf32>
    %cst_12 = arith.constant 0.000000e+00 : f32
    %cst_13 = arith.constant 6.000000e+00 : f32
    %18 = vector.broadcast %cst_12 : f32 to vector<34x128xf32>
    %19 = arith.maximumf %18, %17 : vector<34x128xf32>
    %20 = vector.broadcast %cst_13 : f32 to vector<34x128xf32>
    %21 = arith.minimumf %20, %19 : vector<34x128xf32>
    %c0_14 = arith.constant 0 : index
    %c0_15 = arith.constant 0 : index
    %22 = vector.load %arg4[%c0_14, %c0_15] : memref<2x34xf32, #tpu.memory_space<vmem>>, vector<2x34xf32>
    %cst_16 = arith.constant dense<0.000000e+00> : vector<2x128xf32>
    %23 = tpu.matmul %22, %21, %cst_16 {dimension_numbers = #tpu.dot_dimension_numbers<[1], [0], [0], [1], [0, 0, 1, 1], [], []>} : vector<2x34xf32>, vector<34x128xf32>, vector<2x128xf32> -> vector<2x128xf32>
    %c0_17 = arith.constant 0 : index
    %c0_18 = arith.constant 0 : index
    %24 = vector.load %arg5[%c0_17, %c0_18] : memref<128x128xbf16, #tpu.memory_space<vmem>>, vector<128x128xbf16>
    %cst_19 = arith.constant dense<0.000000e+00> : vector<2x128xf32>
    %25 = tpu.matmul %23, %24, %cst_19 {dimension_numbers = #tpu.dot_dimension_numbers<[1], [0], [0], [1], [0, 0, 1, 1], [], []>} : vector<2x128xf32>, vector<128x128xbf16>, vector<2x128xf32> -> vector<2x128xf32>
    %c0_20 = arith.constant 0 : index
    %c0_21 = arith.constant 0 : index
    %26 = vector.load %arg6[%c0_20, %c0_21] : memref<1x128xf32, #tpu.memory_space<vmem>>, vector<1x128xf32>
    %27 = vector.broadcast %26 : vector<1x128xf32> to vector<2x128xf32>
    %28 = arith.addf %25, %27 : vector<2x128xf32>
    %c0_22 = arith.constant 0 : index
    %c0_23 = arith.constant 0 : index
    %29 = vector.load %arg7[%c0_22, %c0_23] : memref<2x128xf32, #tpu.memory_space<vmem>>, vector<2x128xf32>
    tpu.vector_store %arg7[%c0_22, %c0_23], %28 {strides = array<i32>} : memref<2x128xf32, #tpu.memory_space<vmem>>, vector<2x128xf32>,
    return
  }
  func.func @transform_0(%arg0: i32) -> (i32, i32) {
    %c0_i32 = arith.constant 0 : i32
    %c0_i32_0 = arith.constant 0 : i32
    return %arg0, %c0_i32 : i32, i32
  }
  func.func @transform_1(%arg0: i32) -> (i32, i32, i32) {
    %c0_i32 = arith.constant 0 : i32
    %c0_i32_0 = arith.constant 0 : i32
    %c0_i32_1 = arith.constant 0 : i32
    %c0_i32_2 = arith.constant 0 : i32
    return %c0_i32, %c0_i32_0, %c0_i32_1 : i32, i32, i32
  }
  func.func @transform_2(%arg0: i32) -> (i32, i32) {
    %c0_i32 = arith.constant 0 : i32
    %c0_i32_0 = arith.constant 0 : i32
    %c0_i32_1 = arith.constant 0 : i32
    return %c0_i32, %c0_i32_0 : i32, i32
  }
  func.func @transform_3(%arg0: i32) -> (i32, i32) {
    %c0_i32 = arith.constant 0 : i32
    %c0_i32_0 = arith.constant 0 : i32
    %c0_i32_1 = arith.constant 0 : i32
    return %c0_i32, %c0_i32_0 : i32, i32
  }
  func.func @transform_4(%arg0: i32) -> (i32, i32) {
    %c0_i32 = arith.constant 0 : i32
    %c0_i32_0 = arith.constant 0 : i32
    %c0_i32_1 = arith.constant 0 : i32
    return %c0_i32, %c0_i32_0 : i32, i32
  }
  func.func @transform_5(%arg0: i32) -> (i32, i32) {
    %c0_i32 = arith.constant 0 : i32
    %c0_i32_0 = arith.constant 0 : i32
    %c0_i32_1 = arith.constant 0 : i32
    return %c0_i32, %c0_i32_0 : i32, i32
  }
  func.func @transform_6(%arg0: i32) -> (i32, i32) {
    %c0_i32 = arith.constant 0 : i32
    %c0_i32_0 = arith.constant 0 : i32
    return %arg0, %c0_i32 : i32, i32
  }
}

</mosaic_0001>

<llo_original>
// kernel: tpu_custom_call.1
$region0: #{tpu_custom_call.1}
  #allocation0 [shape = 'u32[]', space=smem, size = 0x4, offset = 0x4, fixed_abs, tag = 'smem constant byte address 0x4 - core index']
  #allocation1 [shape = 'u32[144,128]{1,0:T(1,128)}', space=vmem, size = 0x12000, scoped, tag = 'internal scratch']
  %s0 = inlined_call_operand.hbm [shape: bf16[36,128], index: 0, kind: input, shape index: {}]
  %s1 = inlined_call_operand.hbm [shape: bf16[3,128,128], index: 1, kind: input, shape index: {}]
  %s2 = inlined_call_operand.vmem [shape: f32[1,128], index: 2, kind: input, shape index: {}]
  %s3 = inlined_call_operand.vmem [shape: f32[2,34], index: 3, kind: input, shape index: {}]
  %s4 = inlined_call_operand.hbm [shape: bf16[128,128], index: 4, kind: input, shape index: {}]
  %s5 = inlined_call_operand.vmem [shape: f32[1,128], index: 5, kind: input, shape index: {}]
  %s6 = inlined_call_operand.hbm [shape: f32[2,128], index: 6, kind: output, shape index: {}]
  %s7 = sld [smem:[#allocation0]]
  $region46: #{tpu_custom_call.1} parent=0
    _
  %s9 = ssub.s32 1, %s7
  %s10 = scalar_select 0, %s9, %s7
  $region1: #{tpu_custom_call.1} parent=0
    #allocation2 [shape = 'u8[10240]{0}', space=vmem, size = 0x2800, scoped, tag = 'input window, operand 0, single buffered']
    #allocation3 [shape = 's32[1]{0}', space=sflag, size = 0x4, scoped, tag = 'scoped memory for tpu_custom_call.1']
    #allocation4 [shape = 's32[1]{0}', space=sflag, size = 0x4, scoped, tag = 'scoped memory for tpu_custom_call.1']
    #allocation5 [shape = 'u8[98304]{0}', space=vmem, size = 0x18000, scoped, tag = 'input window, operand 1, single buffered']
    #allocation6 [shape = 's32[1]{0}', space=sflag, size = 0x4, scoped, tag = 'scoped memory for tpu_custom_call.1']
    #allocation7 [shape = 'u8[32768]{0}', space=vmem, size = 0x8000, scoped, tag = 'input window, operand 4, single buffered']
    #allocation8 [shape = 'u8[1024]{0}', space=vmem, size = 0x400, scoped, tag = 'output window, operand 0, single buffered']
    %11 = vsyncpa [#allocation3], 0
    %12 = vsyncpa [#allocation6], 0
    %13 = vsyncpa [#allocation4], 0
    // Predicated region
    $region2: #{tpu_custom_call.1} parent=1 // pred_check
      _
    $region3: #{tpu_custom_call.1} parent=1 // pred_check_branch
      %15 = sbr.rel (0) target = $region5
    $region4: #{tpu_custom_call.1} parent=1 // pred_region
      %s17 = ssub.s32 320, 320
      %18 = vsyncadd [#allocation3], %s17
      %s19 = sshll.u32 [#allocation2], 4
      %s20 = int_to_ptr.vmem [resolvable:$true] %s19
      %25 = dma.hbm_to_vmem [thread:$0]  %s0, 320, %s20, [#allocation3], 64, 64, 4
    $region5: #{tpu_custom_call.1} parent=1 // pred_fallthru
      _
    // Predicated region
    $region6: #{tpu_custom_call.1} parent=1 // pred_check
      _
    $region7: #{tpu_custom_call.1} parent=1 // pred_check_branch
      %27 = sbr.rel (0) target = $region9
    $region8: #{tpu_custom_call.1} parent=1 // pred_region
      %s29 = ssub.s32 3072, 3072
      %30 = vsyncadd [#allocation6], %s29
      %s31 = sshll.u32 [#allocation5], 4
      %s32 = int_to_ptr.vmem [resolvable:$true] %s31
      %37 = dma.hbm_to_vmem [thread:$0]  %s1, 3072, %s32, [#allocation6], 64, 64, 4
    $region9: #{tpu_custom_call.1} parent=1 // pred_fallthru
      _
    // Predicated region
    $region10: #{tpu_custom_call.1} parent=1 // pred_check
      _
    $region11: #{tpu_custom_call.1} parent=1 // pred_check_branch
      %39 = sbr.rel (0) target = $region13
    $region12: #{tpu_custom_call.1} parent=1 // pred_region
      _
    $region13: #{tpu_custom_call.1} parent=1 // pred_fallthru
      _
    // Predicated region
    $region14: #{tpu_custom_call.1} parent=1 // pred_check
      _
    $region15: #{tpu_custom_call.1} parent=1 // pred_check_branch
      %41 = sbr.rel (0) target = $region17
    $region16: #{tpu_custom_call.1} parent=1 // pred_region
      _
    $region17: #{tpu_custom_call.1} parent=1 // pred_fallthru
      _
    // Predicated region
    $region18: #{tpu_custom_call.1} parent=1 // pred_check
      _
    $region19: #{tpu_custom_call.1} parent=1 // pred_check_branch
      %43 = sbr.rel (0) target = $region21
    $region20: #{tpu_custom_call.1} parent=1 // pred_region
      %s45 = ssub.s32 1024, 1024
      %46 = vsyncadd [#allocation6], %s45
      %s47 = sshll.u32 [#allocation7], 4
      %s48 = int_to_ptr.vmem [resolvable:$true] %s47
      %53 = dma.hbm_to_vmem [thread:$0]  %s4, 1024, %s48, [#allocation6], 64, 64, 4
    $region21: #{tpu_custom_call.1} parent=1 // pred_fallthru
      _
    // Predicated region
    $region22: #{tpu_custom_call.1} parent=1 // pred_check
      _
    $region23: #{tpu_custom_call.1} parent=1 // pred_check_branch
      %55 = sbr.rel (0) target = $region25
    $region24: #{tpu_custom_call.1} parent=1 // pred_region
      _
    $region25: #{tpu_custom_call.1} parent=1 // pred_fallthru
      _
    // Predicated region
    $region26: #{tpu_custom_call.1} parent=1 // pred_check
      _
    $region27: #{tpu_custom_call.1} parent=1 // pred_check_branch
      %57 = sbr.rel (0) target = $region29
    $region28: #{tpu_custom_call.1} parent=1 // pred_region
      %58 = dma.done [#allocation3], 320
    $region29: #{tpu_custom_call.1} parent=1 // pred_fallthru
      _
    // Predicated region
    $region30: #{tpu_custom_call.1} parent=1 // pred_check
      _
    $region31: #{tpu_custom_call.1} parent=1 // pred_check_branch
      %60 = sbr.rel (0) target = $region33
    $region32: #{tpu_custom_call.1} parent=1 // pred_region
      %61 = dma.done [#allocation6], 3072
    $region33: #{tpu_custom_call.1} parent=1 // pred_fallthru
      _
    // Predicated region
    $region34: #{tpu_custom_call.1} parent=1 // pred_check
      _
    $region35: #{tpu_custom_call.1} parent=1 // pred_check_branch
      %63 = sbr.rel (0) target = $region37
    $region36: #{tpu_custom_call.1} parent=1 // pred_region
      %64 = dma.done [#allocation6], 1024
    $region37: #{tpu_custom_call.1} parent=1 // pred_fallthru
      _
    %v66 = vld [vmem:[#allocation2] sm:$0xf]
    %v67 = vld [vmem:[#allocation2 + $0x4] sm:$0xf]
    %v68 = vld [vmem:[#allocation2 + $0x8] sm:$0xf]
    %v69 = vld [vmem:[#allocation2 + $0xc] sm:$0xf]
    %v70 = vld [vmem:[#allocation2 + $0x10] sm:$0x3]
    %v71 = vld [vmem:[#allocation5] sm:$0xf]
    %v72 = vld [vmem:[#allocation5 + $0x4] sm:$0xf]
    %v73 = vld [vmem:[#allocation5 + $0x8] sm:$0xf]
    %v74 = vld [vmem:[#allocation5 + $0xc] sm:$0xf]
    %v75 = vld [vmem:[#allocation5 + $0x10] sm:$0xf]
    %v76 = vld [vmem:[#allocation5 + $0x14] sm:$0xf]
    %v77 = vld [vmem:[#allocation5 + $0x18] sm:$0xf]
    %v78 = vld [vmem:[#allocation5 + $0x1c] sm:$0xf]
    %v79 = vld [vmem:[#allocation5 + $0x20] sm:$0xf]
    %v80 = vld [vmem:[#allocation5 + $0x24] sm:$0xf]
    %v81 = vld [vmem:[#allocation5 + $0x28] sm:$0xf]
    %v82 = vld [vmem:[#allocation5 + $0x2c] sm:$0xf]
    %v83 = vld [vmem:[#allocation5 + $0x30] sm:$0xf]
    %v84 = vld [vmem:[#allocation5 + $0x34] sm:$0xf]
    %v85 = vld [vmem:[#allocation5 + $0x38] sm:$0xf]
    %v86 = vld [vmem:[#allocation5 + $0x3c] sm:$0xf]
    %s87 = scalar_lea.vmem [#allocation5], 64
    %v88 = vld [vmem:[%s87] sm:$0xf]
    %v89 = vld [vmem:[%s87 + $0x4] sm:$0xf]
    %v90 = vld [vmem:[%s87 + $0x8] sm:$0xf]
    %v91 = vld [vmem:[%s87 + $0xc] sm:$0xf]
    %v92 = vld [vmem:[%s87 + $0x10] sm:$0xf]
    %v93 = vld [vmem:[%s87 + $0x14] sm:$0xf]
    %v94 = vld [vmem:[%s87 + $0x18] sm:$0xf]
    %v95 = vld [vmem:[%s87 + $0x1c] sm:$0xf]
    %v96 = vld [vmem:[%s87 + $0x20] sm:$0xf]
    %v97 = vld [vmem:[%s87 + $0x24] sm:$0xf]
    %v98 = vld [vmem:[%s87 + $0x28] sm:$0xf]
    %v99 = vld [vmem:[%s87 + $0x2c] sm:$0xf]
    %v100 = vld [vmem:[%s87 + $0x30] sm:$0xf]
    %v101 = vld [vmem:[%s87 + $0x34] sm:$0xf]
    %v102 = vld [vmem:[%s87 + $0x38] sm:$0xf]
    %v103 = vld [vmem:[%s87 + $0x3c] sm:$0xf]
    %v109 = vunpack.c.l.b16 %v66
    %v110 = vunpack.c.l.b16 %v67
    %v111 = vunpack.c.l.b16 %v68
    %v112 = vunpack.c.l.b16 %v69
    %v113 = vunpack.c.l.b16 %v70
    %v114 = vpack.c.b16 %v110, %v109
    %v115 = vpack.c.b16 %v112, %v111
    %v116 = vpack.c.b16 %v113, %v113
    %vm117 = vsmask.f32 7424
    %v119 = vshrl.u32 %v114, 16
    %v121 = vshll.u32 %v114, 16
    %v123 = vrot.slane %v121, 1
    %v124 = vor.u32 %v119, %v123
    %v126 = vshll.u32 %v115, 16
    %v128 = vrot.slane %v126, 1
    %v129 = vsel %vm117, %v124, %v128
    %v130 = vshrl.u32 %v115, 16
    %v132 = vor.u32 %v130, %v128
    %v134 = vshll.u32 %v116, 16
    %v136 = vrot.slane %v134, 1
    %v137 = vsel %vm117, %v132, %v136
    %v138 = vshrl.u32 %v116, 16
    %v140 = vor.u32 %v138, %v136
    %v160 = vunpack.c.l.b16 %v88
    %v161 = vunpack.c.l.b16 %v89
    %v162 = vunpack.c.l.b16 %v90
    %v163 = vunpack.c.l.b16 %v91
    %v164 = vunpack.c.l.b16 %v92
    %v165 = vunpack.c.l.b16 %v93
    %v166 = vunpack.c.l.b16 %v94
    %v167 = vunpack.c.l.b16 %v95
    %v168 = vunpack.c.l.b16 %v96
    %v169 = vunpack.c.l.b16 %v97
    %v170 = vunpack.c.l.b16 %v98
    %v171 = vunpack.c.l.b16 %v99
    %v172 = vunpack.c.l.b16 %v100
    %v173 = vunpack.c.l.b16 %v101
    %v174 = vunpack.c.l.b16 %v102
    %v175 = vunpack.c.l.b16 %v103
    %v176 = vpack.c.b16 %v161, %v160
    %v177 = vpack.c.b16 %v163, %v162
    %v178 = vpack.c.b16 %v165, %v164
    %v179 = vpack.c.b16 %v167, %v166
    %v180 = vpack.c.b16 %v169, %v168
    %v181 = vpack.c.b16 %v171, %v170
    %v182 = vpack.c.b16 %v173, %v172
    %v183 = vpack.c.b16 %v175, %v174
    %192 = vmatprep.subr.bf16.mxu0 0
    %193 = vmatpush1.bf16.msra.mxu0 %v176
    %194 = vmatprep.subr.bf16.mxu0 0
    %195 = vmatpush1.bf16.msra.mxu0 %v177
    %196 = vmatprep.subr.bf16.mxu0 0
    %197 = vmatpush1.bf16.msra.mxu0 %v178
    %198 = vmatprep.subr.bf16.mxu0 0
    %199 = vmatpush1.bf16.msra.mxu0 %v179
    %200 = vmatprep.subr.bf16.mxu0 0
    %201 = vmatpush1.bf16.msra.mxu0 %v180
    %202 = vmatprep.subr.bf16.mxu0 0
    %203 = vmatpush1.bf16.msra.mxu0 %v181
    %204 = vmatprep.subr.bf16.mxu0 0
    %205 = vmatpush1.bf16.msra.mxu0 %v182
    %206 = vmatprep.subr.bf16.mxu0 0
    %207 = vmatpush1.bf16.msra.mxu0 %v183
    %208 = vmatprep.subr.bf16.mxu0 0
    %209 = vmatpush1.bf16.msra.mxu0 0
    %210 = vmatprep.subr.bf16.mxu0 0
    %211 = vmatpush1.bf16.msra.mxu0 0
    %212 = vmatprep.subr.bf16.mxu0 0
    %213 = vmatpush1.bf16.msra.mxu0 0
    %214 = vmatprep.subr.bf16.mxu0 0
    %215 = vmatpush1.bf16.msra.mxu0 0
    %216 = vmatprep.subr.bf16.mxu0 0
    %217 = vmatpush1.bf16.msra.mxu0 0
    %218 = vmatprep.subr.bf16.mxu0 0
    %219 = vmatpush1.bf16.msra.mxu0 0
    %220 = vmatprep.subr.bf16.mxu0 0
    %221 = vmatpush1.bf16.msra.mxu0 0
    %222 = vmatprep.subr.bf16.mxu0 0
    %223 = vmatpush1.bf16.msra.mxu0 0
    %224 = vmatprep.mubr.bf16.mxu0 0
    %225 = vmatmul.mubr.bf16.gmra.mrb[0].mxu0 %v129
    %v226 = vpop.f32.mrb[0].mxu0
    %v227 = vadd.f32 0.0, %v226
    %v228 = vpop.f32.mrb[0].mxu0
    %v229 = vpop.f32.mrb[0].mxu0
    %v230 = vadd.f32 0.0, %v229
    %v231 = vpop.f32.mrb[0].mxu0
    %232 = vmatprep.mubr.bf16.mxu0 0
    %233 = vmatmul.mubr.bf16.gmra.mrb[0].mxu0 %v137
    %v234 = vpop.f32.mrb[0].mxu0
    %v235 = vadd.f32 0.0, %v234
    %v236 = vpop.f32.mrb[0].mxu0
    %v237 = vpop.f32.mrb[0].mxu0
    %v238 = vadd.f32 0.0, %v237
    %v239 = vpop.f32.mrb[0].mxu0
    %240 = vmatprep.mubr.bf16.mxu0 0
    %241 = vmatmul.mubr.bf16.gmra.mrb[0].mxu0 %v140
    %v242 = vpop.f32.mrb[0].mxu0
    %v243 = vadd.f32 0.0, %v242
    %v244 = vpop.f32.mrb[0].mxu0
    %v245 = vpop.f32.mrb[0].mxu0
    %v246 = vpop.f32.mrb[0].mxu0
    %247 = vdwg.mxu0
    %v267 = vunpack.c.l.b16 %v71
    %v268 = vunpack.c.l.b16 %v72
    %v269 = vunpack.c.l.b16 %v73
    %v270 = vunpack.c.l.b16 %v74
    %v271 = vunpack.c.l.b16 %v75
    %v272 = vunpack.c.l.b16 %v76
    %v273 = vunpack.c.l.b16 %v77
    %v274 = vunpack.c.l.b16 %v78
    %v275 = vunpack.c.l.b16 %v79
    %v276 = vunpack.c.l.b16 %v80
    %v277 = vunpack.c.l.b16 %v81
    %v278 = vunpack.c.l.b16 %v82
    %v279 = vunpack.c.l.b16 %v83
    %v280 = vunpack.c.l.b16 %v84
    %v281 = vunpack.c.l.b16 %v85
    %v282 = vunpack.c.l.b16 %v86
    %v283 = vpack.c.b16 %v268, %v267
    %v284 = vpack.c.b16 %v270, %v269
    %v285 = vpack.c.b16 %v272, %v271
    %v286 = vpack.c.b16 %v274, %v273
    %v287 = vpack.c.b16 %v276, %v275
    %v288 = vpack.c.b16 %v278, %v277
    %v289 = vpack.c.b16 %v280, %v279
    %v290 = vpack.c.b16 %v282, %v281
    %299 = vmatprep.subr.bf16.mxu0 0
    %300 = vmatpush1.bf16.msra.mxu0 %v283
    %301 = vmatprep.subr.bf16.mxu0 0
    %302 = vmatpush1.bf16.msra.mxu0 %v284
    %303 = vmatprep.subr.bf16.mxu0 0
    %304 = vmatpush1.bf16.msra.mxu0 %v285
    %305 = vmatprep.subr.bf16.mxu0 0
    %306 = vmatpush1.bf16.msra.mxu0 %v286
    %307 = vmatprep.subr.bf16.mxu0 0
    %308 = vmatpush1.bf16.msra.mxu0 %v287
    %309 = vmatprep.subr.bf16.mxu0 0
    %310 = vmatpush1.bf16.msra.mxu0 %v288
    %311 = vmatprep.subr.bf16.mxu0 0
    %312 = vmatpush1.bf16.msra.mxu0 %v289
    %313 = vmatprep.subr.bf16.mxu0 0
    %314 = vmatpush1.bf16.msra.mxu0 %v290
    %315 = vmatprep.subr.bf16.mxu0 0
    %316 = vmatpush1.bf16.msra.mxu0 0
    %317 = vmatprep.subr.bf16.mxu0 0
    %318 = vmatpush1.bf16.msra.mxu0 0
    %319 = vmatprep.subr.bf16.mxu0 0
    %320 = vmatpush1.bf16.msra.mxu0 0
    %321 = vmatprep.subr.bf16.mxu0 0
    %322 = vmatpush1.bf16.msra.mxu0 0
    %323 = vmatprep.subr.bf16.mxu0 0
    %324 = vmatpush1.bf16.msra.mxu0 0
    %325 = vmatprep.subr.bf16.mxu0 0
    %326 = vmatpush1.bf16.msra.mxu0 0
    %327 = vmatprep.subr.bf16.mxu0 0
    %328 = vmatpush1.bf16.msra.mxu0 0
    %329 = vmatprep.subr.bf16.mxu0 0
    %330 = vmatpush1.bf16.msra.mxu0 0
    %331 = vmatprep.mubr.bf16.mxu0 0
    %332 = vmatmul.mubr.bf16.gmra.mrb[0].mxu0 %v114
    %v333 = vpop.f32.mrb[0].mxu0
    %v334 = vadd.f32 %v227, %v333
    %v335 = vpop.f32.mrb[0].mxu0
    %v336 = vpop.f32.mrb[0].mxu0
    %v337 = vadd.f32 %v230, %v336
    %v338 = vpop.f32.mrb[0].mxu0
    %339 = vmatprep.mubr.bf16.mxu0 0
    %340 = vmatmul.mubr.bf16.gmra.mrb[0].mxu0 %v115
    %v341 = vpop.f32.mrb[0].mxu0
    %v342 = vadd.f32 %v235, %v341
    %v343 = vpop.f32.mrb[0].mxu0
    %v344 = vpop.f32.mrb[0].mxu0
    %v345 = vadd.f32 %v238, %v344
    %v346 = vpop.f32.mrb[0].mxu0
    %347 = vmatprep.mubr.bf16.mxu0 0
    %348 = vmatmul.mubr.bf16.gmra.mrb[0].mxu0 %v116
    %v349 = vpop.f32.mrb[0].mxu0
    %v350 = vadd.f32 %v243, %v349
    %v351 = vpop.f32.mrb[0].mxu0
    %v352 = vpop.f32.mrb[0].mxu0
    %v353 = vpop.f32.mrb[0].mxu0
    %354 = vdwg.mxu0
    %s355 = scalar_lea.vmem [#allocation5], 128
    %v356 = vld [vmem:[%s355] sm:$0xf]
    %v357 = vld [vmem:[%s355 + $0x4] sm:$0xf]
    %v358 = vld [vmem:[%s355 + $0x8] sm:$0xf]
    %v359 = vld [vmem:[%s355 + $0xc] sm:$0xf]
    %v360 = vld [vmem:[%s355 + $0x10] sm:$0xf]
    %v361 = vld [vmem:[%s355 + $0x14] sm:$0xf]
    %v362 = vld [vmem:[%s355 + $0x18] sm:$0xf]
    %v363 = vld [vmem:[%s355 + $0x1c] sm:$0xf]
    %v364 = vld [vmem:[%s355 + $0x20] sm:$0xf]
    %v365 = vld [vmem:[%s355 + $0x24] sm:$0xf]
    %v366 = vld [vmem:[%s355 + $0x28] sm:$0xf]
    %v367 = vld [vmem:[%s355 + $0x2c] sm:$0xf]
    %v368 = vld [vmem:[%s355 + $0x30] sm:$0xf]
    %v369 = vld [vmem:[%s355 + $0x34] sm:$0xf]
    %v370 = vld [vmem:[%s355 + $0x38] sm:$0xf]
    %v371 = vld [vmem:[%s355 + $0x3c] sm:$0xf]
    %vm372 = vcmask 1046528
    %v373 = vrot.slane %v114, 1
    %v374 = vrot.slane %v115, 1
    %v375 = vsel %vm372, %v373, %v374
    %v376 = vrot.slane %v116, 1
    %v377 = vsel %vm372, %v374, %v376
    %v397 = vunpack.c.l.b16 %v356
    %v398 = vunpack.c.l.b16 %v357
    %v399 = vunpack.c.l.b16 %v358
    %v400 = vunpack.c.l.b16 %v359
    %v401 = vunpack.c.l.b16 %v360
    %v402 = vunpack.c.l.b16 %v361
    %v403 = vunpack.c.l.b16 %v362
    %v404 = vunpack.c.l.b16 %v363
    %v405 = vunpack.c.l.b16 %v364
    %v406 = vunpack.c.l.b16 %v365
    %v407 = vunpack.c.l.b16 %v366
    %v408 = vunpack.c.l.b16 %v367
    %v409 = vunpack.c.l.b16 %v368
    %v410 = vunpack.c.l.b16 %v369
    %v411 = vunpack.c.l.b16 %v370
    %v412 = vunpack.c.l.b16 %v371
    %v413 = vpack.c.b16 %v398, %v397
    %v414 = vpack.c.b16 %v400, %v399
    %v415 = vpack.c.b16 %v402, %v401
    %v416 = vpack.c.b16 %v404, %v403
    %v417 = vpack.c.b16 %v406, %v405
    %v418 = vpack.c.b16 %v408, %v407
    %v419 = vpack.c.b16 %v410, %v409
    %v420 = vpack.c.b16 %v412, %v411
    %429 = vmatprep.subr.bf16.mxu0 0
    %430 = vmatpush1.bf16.msra.mxu0 %v413
    %431 = vmatprep.subr.bf16.mxu0 0
    %432 = vmatpush1.bf16.msra.mxu0 %v414
    %433 = vmatprep.subr.bf16.mxu0 0
    %434 = vmatpush1.bf16.msra.mxu0 %v415
    %435 = vmatprep.subr.bf16.mxu0 0
    %436 = vmatpush1.bf16.msra.mxu0 %v416
    %437 = vmatprep.subr.bf16.mxu0 0
    %438 = vmatpush1.bf16.msra.mxu0 %v417
    %439 = vmatprep.subr.bf16.mxu0 0
    %440 = vmatpush1.bf16.msra.mxu0 %v418
    %441 = vmatprep.subr.bf16.mxu0 0
    %442 = vmatpush1.bf16.msra.mxu0 %v419
    %443 = vmatprep.subr.bf16.mxu0 0
    %444 = vmatpush1.bf16.msra.mxu0 %v420
    %445 = vmatprep.subr.bf16.mxu0 0
    %446 = vmatpush1.bf16.msra.mxu0 0
    %447 = vmatprep.subr.bf16.mxu0 0
    %448 = vmatpush1.bf16.msra.mxu0 0
    %449 = vmatprep.subr.bf16.mxu0 0
    %450 = vmatpush1.bf16.msra.mxu0 0
    %451 = vmatprep.subr.bf16.mxu0 0
    %452 = vmatpush1.bf16.msra.mxu0 0
    %453 = vmatprep.subr.bf16.mxu0 0
    %454 = vmatpush1.bf16.msra.mxu0 0
    %455 = vmatprep.subr.bf16.mxu0 0
    %456 = vmatpush1.bf16.msra.mxu0 0
    %457 = vmatprep.subr.bf16.mxu0 0
    %458 = vmatpush1.bf16.msra.mxu0 0
    %459 = vmatprep.subr.bf16.mxu0 0
    %460 = vmatpush1.bf16.msra.mxu0 0
    %461 = vmatprep.mubr.bf16.mxu0 0
    %462 = vmatmul.mubr.bf16.gmra.mrb[0].mxu0 %v375
    %v463 = vpop.f32.mrb[0].mxu0
    %v464 = vadd.f32 0.0, %v463
    %v465 = vpop.f32.mrb[0].mxu0
    %v466 = vpop.f32.mrb[0].mxu0
    %v467 = vadd.f32 0.0, %v466
    %v468 = vpop.f32.mrb[0].mxu0
    %469 = vmatprep.mubr.bf16.mxu0 0
    %470 = vmatmul.mubr.bf16.gmra.mrb[0].mxu0 %v377
    %v471 = vpop.f32.mrb[0].mxu0
    %v472 = vadd.f32 0.0, %v471
    %v473 = vpop.f32.mrb[0].mxu0
    %v474 = vpop.f32.mrb[0].mxu0
    %v475 = vadd.f32 0.0, %v474
    %v476 = vpop.f32.mrb[0].mxu0
    %477 = vmatprep.mubr.bf16.mxu0 0
    %478 = vmatmul.mubr.bf16.gmra.mrb[0].mxu0 %v376
    %v479 = vpop.f32.mrb[0].mxu0
    %v480 = vadd.f32 0.0, %v479
    %v481 = vpop.f32.mrb[0].mxu0
    %v482 = vpop.f32.mrb[0].mxu0
    %v483 = vpop.f32.mrb[0].mxu0
    %484 = vdwg.mxu0
    %v485 = vadd.f32 %v334, %v464
    %v486 = vadd.f32 %v337, %v467
    %v487 = vadd.f32 %v342, %v472
    %v488 = vadd.f32 %v345, %v475
    %v489 = vadd.f32 %v350, %v480
    %v490 = vld [vmem:[%s2] sm:$0x1]
    %v492 = vlaneseq
    %v493 = vshrl.u32 %v492, 7
    %v494 = vsub.s32 0, %v493
    %v495 = vrot.slane %v490, %v494
    %v497 = vadd.f32 %v485, %v495
    %v498 = vadd.f32 %v486, %v495
    %v499 = vadd.f32 %v487, %v495
    %v500 = vadd.f32 %v488, %v495
    %v501 = vadd.f32 %v489, %v495
    %v502 = vmax.f32 %v497, 0.0
    %v503 = vmax.f32 %v498, 0.0
    %v504 = vmax.f32 %v499, 0.0
    %v505 = vmax.f32 %v500, 0.0
    %v506 = vmax.f32 %v501, 0.0
    %v507 = vmin.f32 %v502, 6.0
    %v508 = vmin.f32 %v503, 6.0
    %v509 = vmin.f32 %v504, 6.0
    %v510 = vmin.f32 %v505, 6.0
    %v511 = vmin.f32 %v506, 6.0
    %v512 = vld [vmem:[%s3] sm:$0x3]
    %vm513 = vcmask 277504
    %v515 = vsel %vm513, %v512, 0
    %vm517 = vcmask 1041408
    %v519 = vsel %vm517, %v511, 0
    %521 = vmatprep.subr.mxu0 0.0
    %522 = vmatpush1.msra.mxu0 %v507
    %523 = vmatprep.subr.mxu0 0.0
    %524 = vmatpush1.msra.mxu0 %v508
    %525 = vmatprep.subr.mxu0 0.0
    %526 = vmatpush1.msra.mxu0 %v509
    %527 = vmatprep.subr.mxu0 0.0
    %528 = vmatpush1.msra.mxu0 %v510
    %529 = vmatprep.subr.mxu0 0.0
    %530 = vmatpush1.msra.mxu0 %v519
    %531 = vmatprep.subr.mxu0 0.0
    %532 = vmatpush1.msra.mxu0 0.0
    %533 = vmatprep.subr.mxu0 0.0
    %534 = vmatpush1.msra.mxu0 0.0
    %535 = vmatprep.subr.mxu0 0.0
    %536 = vmatpush1.msra.mxu0 0.0
    %537 = vmatprep.subr.mxu0 0.0
    %538 = vmatpush1.msra.mxu0 0.0
    %539 = vmatprep.subr.mxu0 0.0
    %540 = vmatpush1.msra.mxu0 0.0
    %541 = vmatprep.subr.mxu0 0.0
    %542 = vmatpush1.msra.mxu0 0.0
    %543 = vmatprep.subr.mxu0 0.0
    %544 = vmatpush1.msra.mxu0 0.0
    %545 = vmatprep.subr.mxu0 0.0
    %546 = vmatpush1.msra.mxu0 0.0
    %547 = vmatprep.subr.mxu0 0.0
    %548 = vmatpush1.msra.mxu0 0.0
    %549 = vmatprep.subr.mxu0 0.0
    %550 = vmatpush1.msra.mxu0 0.0
    %551 = vmatprep.subr.mxu0 0.0
    %552 = vmatpush1.msra.mxu0 0.0
    %553 = vmatprep.subr.mxu0 0.0
    %554 = vmatpush1.msra.mxu0 0.0
    %555 = vmatprep.subr.mxu0 0.0
    %556 = vmatpush1.msra.mxu0 0.0
    %557 = vmatprep.subr.mxu0 0.0
    %558 = vmatpush1.msra.mxu0 0.0
    %559 = vmatprep.subr.mxu0 0.0
    %560 = vmatpush1.msra.mxu0 0.0
    %561 = vmatprep.subr.mxu0 0.0
    %562 = vmatpush1.msra.mxu0 0.0
    %563 = vmatprep.subr.mxu0 0.0
    %564 = vmatpush1.msra.mxu0 0.0
    %565 = vmatprep.subr.mxu0 0.0
    %566 = vmatpush1.msra.mxu0 0.0
    %567 = vmatprep.subr.mxu0 0.0
    %568 = vmatpush1.msra.mxu0 0.0
    %569 = vmatprep.subr.mxu0 0.0
    %570 = vmatpush1.msra.mxu0 0.0
    %571 = vmatprep.subr.mxu0 0.0
    %572 = vmatpush1.msra.mxu0 0.0
    %573 = vmatprep.subr.mxu0 0.0
    %574 = vmatpush1.msra.mxu0 0.0
    %575 = vmatprep.subr.mxu0 0.0
    %576 = vmatpush1.msra.mxu0 0.0
    %577 = vmatprep.subr.mxu0 0.0
    %578 = vmatpush1.msra.mxu0 0.0
    %579 = vmatprep.subr.mxu0 0.0
    %580 = vmatpush1.msra.mxu0 0.0
    %581 = vmatprep.subr.mxu0 0.0
    %582 = vmatpush1.msra.mxu0 0.0
    %583 = vmatprep.subr.mxu0 0.0
    %584 = vmatpush1.msra.mxu0 0.0
    %585 = vmatprep.mubr.f32.mxu0 0.0
    %586 = vmatmul.mubr.f32.gmra.mrb[0].mxu0 %v515
    %v587 = vpop.f32.mrb[0].mxu0
    %v588 = vadd.f32 0.0, %v587
    %v589 = vpop.f32.mrb[0].mxu0
    %590 = vdwg.mxu0
    %v591 = vld [vmem:[#allocation7] sm:$0xf]
    %v592 = vld [vmem:[#allocation7 + $0x4] sm:$0xf]
    %v593 = vld [vmem:[#allocation7 + $0x8] sm:$0xf]
    %v594 = vld [vmem:[#allocation7 + $0xc] sm:$0xf]
    %v595 = vld [vmem:[#allocation7 + $0x10] sm:$0xf]
    %v596 = vld [vmem:[#allocation7 + $0x14] sm:$0xf]
    %v597 = vld [vmem:[#allocation7 + $0x18] sm:$0xf]
    %v598 = vld [vmem:[#allocation7 + $0x1c] sm:$0xf]
    %v599 = vld [vmem:[#allocation7 + $0x20] sm:$0xf]
    %v600 = vld [vmem:[#allocation7 + $0x24] sm:$0xf]
    %v601 = vld [vmem:[#allocation7 + $0x28] sm:$0xf]
    %v602 = vld [vmem:[#allocation7 + $0x2c] sm:$0xf]
    %v603 = vld [vmem:[#allocation7 + $0x30] sm:$0xf]
    %v604 = vld [vmem:[#allocation7 + $0x34] sm:$0xf]
    %v605 = vld [vmem:[#allocation7 + $0x38] sm:$0xf]
    %v606 = vld [vmem:[#allocation7 + $0x3c] sm:$0xf]
    %v607 = vld [vmem:[%s5] sm:$0x1]
    %v609 = vlaneseq
    %v610 = vshrl.u32 %v609, 7
    %v611 = vsub.s32 0, %v610
    %v612 = vrot.slane %v607, %v611
    %v630 = vunpack.c.l.b16 %v591
    %v631 = vunpack.c.l.b16 %v592
    %v632 = vunpack.c.l.b16 %v593
    %v633 = vunpack.c.l.b16 %v594
    %v634 = vunpack.c.l.b16 %v595
    %v635 = vunpack.c.l.b16 %v596
    %v636 = vunpack.c.l.b16 %v597
    %v637 = vunpack.c.l.b16 %v598
    %v638 = vunpack.c.l.b16 %v599
    %v639 = vunpack.c.l.b16 %v600
    %v640 = vunpack.c.l.b16 %v601
    %v641 = vunpack.c.l.b16 %v602
    %v642 = vunpack.c.l.b16 %v603
    %v643 = vunpack.c.l.b16 %v604
    %v644 = vunpack.c.l.b16 %v605
    %v645 = vunpack.c.l.b16 %v606
    %v646 = vpack.c.b16 %v631, %v630
    %v647 = vpack.c.b16 %v633, %v632
    %v648 = vpack.c.b16 %v635, %v634
    %v649 = vpack.c.b16 %v637, %v636
    %v650 = vpack.c.b16 %v639, %v638
    %v651 = vpack.c.b16 %v641, %v640
    %v652 = vpack.c.b16 %v643, %v642
    %v653 = vpack.c.b16 %v645, %v644
    %662 = vmatprep.subr.bf16.mxu0 0
    %663 = vmatpush1.bf16.msra.mxu0 %v646
    %664 = vmatprep.subr.bf16.mxu0 0
    %665 = vmatpush1.bf16.msra.mxu0 %v647
    %666 = vmatprep.subr.bf16.mxu0 0
    %667 = vmatpush1.bf16.msra.mxu0 %v648
    %668 = vmatprep.subr.bf16.mxu0 0
    %669 = vmatpush1.bf16.msra.mxu0 %v649
    %670 = vmatprep.subr.bf16.mxu0 0
    %671 = vmatpush1.bf16.msra.mxu0 %v650
    %672 = vmatprep.subr.bf16.mxu0 0
    %673 = vmatpush1.bf16.msra.mxu0 %v651
    %674 = vmatprep.subr.bf16.mxu0 0
    %675 = vmatpush1.bf16.msra.mxu0 %v652
    %676 = vmatprep.subr.bf16.mxu0 0
    %677 = vmatpush1.bf16.msra.mxu0 %v653
    %678 = vmatprep.subr.bf16.mxu0 0
    %679 = vmatpush1.bf16.msra.mxu0 0
    %680 = vmatprep.subr.bf16.mxu0 0
    %681 = vmatpush1.bf16.msra.mxu0 0
    %682 = vmatprep.subr.bf16.mxu0 0
    %683 = vmatpush1.bf16.msra.mxu0 0
    %684 = vmatprep.subr.bf16.mxu0 0
    %685 = vmatpush1.bf16.msra.mxu0 0
    %686 = vmatprep.subr.bf16.mxu0 0
    %687 = vmatpush1.bf16.msra.mxu0 0
    %688 = vmatprep.subr.bf16.mxu0 0
    %689 = vmatpush1.bf16.msra.mxu0 0
    %690 = vmatprep.subr.bf16.mxu0 0
    %691 = vmatpush1.bf16.msra.mxu0 0
    %692 = vmatprep.subr.bf16.mxu0 0
    %693 = vmatpush1.bf16.msra.mxu0 0
    %694 = vmatprep.mubr.f32.mxu0 0.0
    %695 = vmatmul.mubr.f32.gmra.mrb[0].mxu0 %v588
    %v696 = vpop.f32.mrb[0].mxu0
    %v697 = vadd.f32 %v612, %v696
    %v698 = vpop.f32.mrb[0].mxu0
    %699 = vdwg.mxu0
    %700 = vst [vmem:[#allocation8] sm:$0x3] %v697
    // Predicated region
    $region38: #{tpu_custom_call.1} parent=1 // pred_check
      _
    $region39: #{tpu_custom_call.1} parent=1 // pred_check_branch
      %702 = sbr.rel (0) target = $region41
    $region40: #{tpu_custom_call.1} parent=1 // pred_region
      %s704 = ssub.s32 32, 32
      %705 = vsyncadd [#allocation4], %s704
      %s707 = sshll.u32 [#allocation8], 4
      %s708 = int_to_ptr.vmem [resolvable:$true] %s707
      %710 = dma.vmem_to_hbm [thread:$0]  %s708, 32, %s6, [#allocation4]
    $region41: #{tpu_custom_call.1} parent=1 // pred_fallthru
      _
    // Predicated region
    $region42: #{tpu_custom_call.1} parent=1 // pred_check
      _
    $region43: #{tpu_custom_call.1} parent=1 // pred_check_branch
      %712 = sbr.rel (0) target = $region45
    $region44: #{tpu_custom_call.1} parent=1 // pred_region
      %713 = dma.done [#allocation4], 32
    $region45: #{tpu_custom_call.1} parent=1 // pred_fallthru
      _
    %714 = vsyncpa [#allocation3], 1
    %715 = vsyncpa [#allocation6], 1
    %716 = vsyncpa [#allocation4], 1

</llo_original>
